<compile_context>
chip_gen: v7x
topology: tpu7x:2x2x1
jax: 0.10.0
libtpu: 0.0.40
codegen_flags: <defaults>
</compile_context>

<pallas_src>
import functools

import jax
import jax.numpy as jnp
from jax.experimental import pallas as pl
from jax.experimental.pallas import tpu as pltpu


def _round_up(n: int, m: int) -> int:
    return ((n + m - 1) // m) * m


def _sublane_multiple(dtype) -> int:
    # Rows per packed vreg tile: 8 for f32, 16 for bf16, 32 for int8/fp8.
    return max(8, 32 // jnp.dtype(dtype).itemsize)


def _vmem_capacity_bytes() -> int:
    try:
        return int(pltpu.get_tpu_info().vmem_capacity_bytes)
    except Exception:  # non-TPU backend / older runtime: conservative v7x size
        return 64 * 1024 * 1024


def _generation_budget():
    """Returns (physical_vmem, tiling_budget, max_batch_tile) for this TPU gen."""
    cap = _vmem_capacity_bytes()
    if cap >= 96 * 1024 * 1024:
        # v5e / v6e: 128 MiB physical VMEM -> big tiles, generous budget.
        return cap, min(cap - 24 * 1024 * 1024, 104 * 1024 * 1024), 1024
    # v7x: 64 MiB physical VMEM per TensorCore -> keep a safe margin.
    return cap, max(cap // 2, cap - 12 * 1024 * 1024), 512


# ----------------------------- kernel bodies ------------------------------ #

def _two_layer_kernel(x_ref, w1_ref, w2_ref, o_ref):
    # Resident-weights path: both (lane-padded) weight matrices live in VMEM
    # across the whole batch grid; 1/alpha is pre-folded into w2.
    x = x_ref[...].astype(w1_ref.dtype)
    s2 = jnp.dot(x, w1_ref[...], preferred_element_type=jnp.float32)
    x2 = jnp.maximum(s2, 0.0)                                  # ReLU, f32 VPU
    o = jnp.dot(x2.astype(w2_ref.dtype), w2_ref[...],
                preferred_element_type=jnp.float32)
    o_ref[...] = o.astype(o_ref.dtype)


def _two_layer_hstream_kernel(x_ref, w1_ref, w2_ref, o_ref, acc_ref):
    # Hidden-dim streaming path: grid = (batch_tiles, hp_chunks).  w1 column
    # blocks and w2 row blocks are streamed; ReLU is elementwise so chunking Hp
    # is exact; layer-2 partials accumulate into an f32 VMEM scratch.
    k = pl.program_id(1)

    @pl.when(k == 0)
    def _():
        acc_ref[...] = jnp.zeros_like(acc_ref)

    x = x_ref[...].astype(w1_ref.dtype)
    s2 = jnp.dot(x, w1_ref[...], preferred_element_type=jnp.float32)
    x2 = jnp.maximum(s2, 0.0)
    acc_ref[...] += jnp.dot(x2.astype(w2_ref.dtype), w2_ref[...],
                            preferred_element_type=jnp.float32)

    @pl.when(k == pl.num_programs(1) - 1)
    def _():
        o_ref[...] = acc_ref[...].astype(o_ref.dtype)


# --------------------------- one-time weight prep -------------------------- #

def prepare_two_layer_params(w_in, w_out, alpha=1.0, compute_dtype=None, lane=128):
    """One-time weight preparation (per weight update, NOT per forward).

    * transposes PyTorch-layout (out, in) weights to (in, out),
    * folds 1/alpha into the output-layer weights,
    * zero-pads hidden / output feature dims to lane multiples of `lane`
      (lane-dense MXU passes + unmasked output stores),
    * optionally casts weights to `compute_dtype` (bf16 recommended on v6e/v7x).
    """
    hidden, d_in = w_in.shape
    d_out, hidden2 = w_out.shape
    assert hidden == hidden2
    hp = _round_up(hidden, lane)
    dp = _round_up(d_out, lane)

    w1 = jnp.asarray(w_in, jnp.float32).T                       # (d_in, hidden)
    # (1/alpha) * (x2 @ W_out.T) == x2 @ (W_out.T / alpha): fold alpha here.
    w2 = jnp.asarray(w_out, jnp.float32).T / jnp.float32(alpha)  # (hidden, d_out)
    if compute_dtype is not None:
        w1 = w1.astype(compute_dtype)
        w2 = w2.astype(compute_dtype)
    # Zero padding keeps the math exact: padded hidden columns are 0 after ReLU
    # and meet zero rows of w2; padded output columns are exact zeros.
    w1 = jnp.pad(w1, ((0, 0), (0, hp - hidden)))
    w2 = jnp.pad(w2, ((0, hp - hidden), (0, dp - d_out)))
    return w1, w2


# ------------------------------ tile pickers ------------------------------- #

def _pick_batch_tile(batch, d_in, hidden_cols, dp, x_isz, o_isz, sub,
                     weight_bytes, vmem_budget, max_tile):
    tb = max_tile
    while tb > sub:
        per_tile = (2 * tb * d_in * x_isz                   # double-buffered x
                    + 2 * tb * dp * o_isz                   # double-buffered out
                    + tb * hidden_cols * 4 + tb * dp * 4)   # f32 intermediates
        if weight_bytes + per_tile <= vmem_budget:
            break
        tb //= 2
    tb = max(sub, (tb // sub) * sub)
    if batch <= sub:
        return batch                      # full-extent block (allowed)
    # Keep >= 2 grid steps so the "parallel" batch axis can shard across both
    # v7x TensorCores (grid=(1,) would leave one TC idle).
    tb = min(tb, _round_up(pl.cdiv(batch, 2), sub))
    return max(sub, tb)


def _pick_hp_tile(d_in, hp, dp, tb, x_isz, o_isz, w_isz, vmem_budget, lane=128):
    assert hp % lane == 0
    n = hp // lane
    for d in range(n, 0, -1):
        if n % d:                          # tk must divide hp: no partial K blocks
            continue
        tk = d * lane
        per = (2 * (d_in * tk + tk * dp) * w_isz            # 2x-buffered chunks
               + 2 * tb * d_in * x_isz + 2 * tb * dp * o_isz
               + tb * tk * 4 + tb * dp * 4)                 # s2 chunk + f32 acc
        if per <= vmem_budget:
            return tk
    return lane


# --------------------------------- forward --------------------------------- #

def two_layer_net_forward(x, w1, w2, *, d_out=None, batch_tile=None,
                          hp_tile=None, slice_output=True):
    """x: (B, d_in) f32/bf16; w1: (d_in, Hp), w2: (Hp, Dp) from
    prepare_two_layer_params() (1/alpha already folded into w2)."""
    B, d_in = x.shape
    d_in2, hp = w1.shape
    hp2, dp = w2.shape
    assert d_in == d_in2 and hp == hp2
    if d_out is None:
        d_out = dp

    x_isz = jnp.dtype(x.dtype).itemsize
    o_isz = x_isz                                 # output keeps activation dtype
    w_isz = jnp.dtype(w1.dtype).itemsize
    sub = _sublane_multiple(x.dtype)

    cap, budget, max_tile = _generation_budget()
    resident_weight_bytes = (d_in * hp + hp * dp) * w_isz      # single-buffered

    # ---- choose path: fully-resident weights vs. hidden-dim streaming ----
    if hp_tile is not None:
        use_stream = hp_tile < hp
    else:
        probe_tb = min(256, max_tile)             # MXU-friendly batch tile probe
        probe = (resident_weight_bytes
                 + 2 * probe_tb * d_in * x_isz + 2 * probe_tb * dp * o_isz
                 + probe_tb * hp * 4 + probe_tb * dp * 4)
        use_stream = probe > budget

    if not use_stream:
        if batch_tile is None:
            tb = _pick_batch_tile(B, d_in, hp, dp, x_isz, o_isz, sub,
                                  resident_weight_bytes, budget, max_tile)
        else:
            tb = min(_round_up(batch_tile, sub), _round_up(B, sub))
        grid = (pl.cdiv(B, tb),)
        est = (resident_weight_bytes
               + 2 * tb * d_in * x_isz + 2 * tb * dp * o_isz
               + tb * hp * 4 + tb * dp * 4)
        kernel = _two_layer_kernel
        in_specs = [
            pl.BlockSpec((tb, d_in), lambda i: (i, 0)),          # x batch tile
            # Constant index_map + single buffer: weights are DMA'd once and
            # stay resident in VMEM across the whole batch grid.
            pl.BlockSpec((d_in, hp), lambda i: (0, 0),
                         pipeline_mode=pl.Buffered(1)),
            pl.BlockSpec((hp, dp), lambda i: (0, 0),
                         pipeline_mode=pl.Buffered(1)),
        ]
        out_specs = pl.BlockSpec((tb, dp), lambda i: (i, 0))
        scratch_shapes = []
        dim_sem = ("parallel",)
    else:
        if batch_tile is None:
            chunk_bytes = 2 * (d_in * 128 + 128 * dp) * w_isz    # min streamed chunk
            tb = _pick_batch_tile(B, d_in, 128, dp, x_isz, o_isz, sub,
                                  chunk_bytes, budget, max_tile)
        else:
            tb = min(_round_up(batch_tile, sub), _round_up(B, sub))
        tk = hp_tile if hp_tile is not None else _pick_hp_tile(
            d_in, hp, dp, tb, x_isz, o_isz, w_isz, budget)
        assert hp % tk == 0, "hp_tile must evenly divide the padded hidden dim"
        grid = (pl.cdiv(B, tb), hp // tk)
        est = (2 * (d_in * tk + tk * dp) * w_isz
               + 2 * tb * d_in * x_isz + 2 * tb * dp * o_isz
               + tb * tk * 4 + tb * dp * 4)
        kernel = _two_layer_hstream_kernel
        in_specs = [
            pl.BlockSpec((tb, d_in), lambda i, k: (i, 0)),       # x tile (reused)
            pl.BlockSpec((d_in, tk), lambda i, k: (0, k)),       # w1 column chunk
            pl.BlockSpec((tk, dp), lambda i, k: (k, 0)),         # w2 row chunk
        ]
        out_specs = pl.BlockSpec((tb, dp), lambda i, k: (i, 0))
        scratch_shapes = [pltpu.VMEM((tb, dp), jnp.float32)]     # layer-2 f32 acc
        dim_sem = ("parallel", "arbitrary")

    vmem_limit = int(min(cap, budget + 8 * 1024 * 1024,
                         max(32 * 1024 * 1024, (3 * est) // 2)))

    cost = pl.CostEstimate(
        flops=2 * B * (d_in * hp + hp * dp),
        transcendentals=0,
        bytes_accessed=(B * d_in * x_isz
                        + (d_in * hp + hp * dp) * w_isz
                        + B * dp * o_isz),
    )

    out_padded = pl.pallas_call(
        kernel,
        out_shape=jax.ShapeDtypeStruct((B, dp), x.dtype),
        grid_spec=pltpu.PrefetchScalarGridSpec(
            num_scalar_prefetch=0,
            grid=grid,
            in_specs=in_specs,
            out_specs=out_specs,
            scratch_shapes=scratch_shapes,
        ),
        compiler_params=pltpu.CompilerParams(
            dimension_semantics=dim_sem,
            vmem_limit_bytes=vmem_limit,
        ),
        cost_estimate=cost,
    )(x, w1, w2)

    if slice_output and d_out != dp:
        # NOTE: for d_out << 128, prefer slice_output=False and let the consumer
        # accept the lane-padded (B, Dp) slab (padded columns are exact zeros) —
        # the standalone slice costs an extra HBM pass on this mem-bound shape.
        return out_padded[:, :d_out]
    return out_padded


# ----------------------------------- demo ---------------------------------- #

if __name__ == "__main__":
    # Module hyperparameters (deterministic synthetic init, small shapes).
    input_size, hidden_size, output_size = 16, 32, 8
    beta_1, beta_2 = 0.5, 2.0
    alpha = 2.0
    batch = 512

    key = jax.random.PRNGKey(0)
    k_x, k_w1, k_w2, k_w3, k_w4 = jax.random.split(key, 5)

    # PyTorch Linear weight layout is (out_features, in_features);
    # weight_init: normal(0,1) * beta_2 (input layer) / * beta_1 (output layer).
    w_in = beta_2 * jax.random.normal(k_w1, (hidden_size, input_size), jnp.float32)
    w_out = beta_1 * jax.random.normal(k_w2, (output_size, hidden_size), jnp.float32)
    x = jax.random.normal(k_x, (batch, input_size), jnp.float32)

    ref = (1.0 / alpha) * (jnp.maximum(x @ w_in.T, 0.0) @ w_out.T)

    # --- path 1: resident-weights kernel, f32 ---
    w1, w2 = prepare_two_layer_params(w_in, w_out, alpha=alpha)
    fwd = jax.jit(functools.partial(two_layer_net_forward, d_out=output_size))
    out = jax.block_until_ready(fwd(x, w1, w2))
    assert out.shape == (batch, output_size)
    assert jnp.allclose(out, ref, atol=1e-4, rtol=1e-4)

    # --- path 2: bf16 weights (full-rate MXU on v6e/v7x), f32 accumulation ---
    w1b, w2b = prepare_two_layer_params(w_in, w_out, alpha=alpha,
                                        compute_dtype=jnp.bfloat16)
    out_bf16 = jax.block_until_ready(fwd(x, w1b, w2b))
    assert jnp.allclose(out_bf16, ref, atol=0.5, rtol=0.05)

    # --- path 3: hidden-dim streaming kernel (exercises the K-accumulate path) ---
    hidden_big = 256
    w_in_big = beta_2 * jax.random.normal(k_w3, (hidden_big, input_size), jnp.float32)
    w_out_big = beta_1 * jax.random.normal(k_w4, (output_size, hidden_big), jnp.float32)
    ref_big = (1.0 / alpha) * (jnp.maximum(x @ w_in_big.T, 0.0) @ w_out_big.T)
    w1s, w2s = prepare_two_layer_params(w_in_big, w_out_big, alpha=alpha)
    fwd_stream = jax.jit(functools.partial(
        two_layer_net_forward, d_out=output_size, hp_tile=128))
    out_stream = jax.block_until_ready(fwd_stream(x, w1s, w2s))
    assert out_stream.shape == (batch, output_size)
    assert jnp.allclose(out_stream, ref_big, atol=1e-3, rtol=1e-3)

    print("KERNEL_OK")
</pallas_src>

<mosaic_0001>
module attributes {stable_mosaic.version = 11 : i64} {
  func.func @_two_layer_kernel(%arg0: i32, %arg1: memref<256x16xf32, #tpu.memory_space<vmem>>, %arg2: memref<16x128xf32, #tpu.memory_space<vmem>>, %arg3: memref<128x128xf32, #tpu.memory_space<vmem>>, %arg4: memref<256x128xf32, #tpu.memory_space<vmem>>) attributes {dimension_semantics = [#tpu.dimension_semantics<parallel>], iteration_bounds = array<i64: 2>, scalar_prefetch = 0 : i64, scratch_operands = 0 : i64, tpu.core_type = #tpu.core_type<tc>, window_params = [{transform_indices = @transform_0, window_bounds = array<i64: 256, 16>}, {pipeline_mode = #tpu.pipeline_mode<synchronous>, transform_indices = @transform_1, window_bounds = array<i64: 16, 128>}, {pipeline_mode = #tpu.pipeline_mode<synchronous>, transform_indices = @transform_2, window_bounds = array<i64: 128, 128>}, {transform_indices = @transform_3, window_bounds = array<i64: 256, 128>}]} {
    %c0 = arith.constant 0 : index
    %c0_0 = arith.constant 0 : index
    %0 = vector.load %arg1[%c0, %c0_0] : memref<256x16xf32, #tpu.memory_space<vmem>>, vector<256x16xf32>
    %c0_1 = arith.constant 0 : index
    %c0_2 = arith.constant 0 : index
    %1 = vector.load %arg2[%c0_1, %c0_2] : memref<16x128xf32, #tpu.memory_space<vmem>>, vector<16x128xf32>
    %cst = arith.constant dense<0.000000e+00> : vector<256x128xf32>
    %2 = tpu.matmul %0, %1, %cst {dimension_numbers = #tpu.dot_dimension_numbers<[1], [0], [0], [1], [0, 0, 1, 1], [], []>} : vector<256x16xf32>, vector<16x128xf32>, vector<256x128xf32> -> vector<256x128xf32>
    %cst_3 = arith.constant 0.000000e+00 : f32
    %3 = vector.broadcast %cst_3 : f32 to vector<256x128xf32>
    %4 = arith.maximumf %2, %3 : vector<256x128xf32>
    %c0_4 = arith.constant 0 : index
    %c0_5 = arith.constant 0 : index
    %5 = vector.load %arg3[%c0_4, %c0_5] : memref<128x128xf32, #tpu.memory_space<vmem>>, vector<128x128xf32>
    %cst_6 = arith.constant dense<0.000000e+00> : vector<256x128xf32>
    %6 = tpu.matmul %4, %5, %cst_6 {dimension_numbers = #tpu.dot_dimension_numbers<[1], [0], [0], [1], [0, 0, 1, 1], [], []>} : vector<256x128xf32>, vector<128x128xf32>, vector<256x128xf32> -> vector<256x128xf32>
    %c0_7 = arith.constant 0 : index
    %c0_8 = arith.constant 0 : index
    %7 = vector.load %arg4[%c0_7, %c0_8] : memref<256x128xf32, #tpu.memory_space<vmem>>, vector<256x128xf32>
    tpu.vector_store %arg4[%c0_7, %c0_8], %6 {strides = array<i32>} : memref<256x128xf32, #tpu.memory_space<vmem>>, vector<256x128xf32>,
    return
  }
  func.func @transform_0(%arg0: i32) -> (i32, i32) {
    %c0_i32 = arith.constant 0 : i32
    %c0_i32_0 = arith.constant 0 : i32
    return %arg0, %c0_i32 : i32, i32
  }
  func.func @transform_1(%arg0: i32) -> (i32, i32) {
    %c0_i32 = arith.constant 0 : i32
    %c0_i32_0 = arith.constant 0 : i32
    %c0_i32_1 = arith.constant 0 : i32
    return %c0_i32, %c0_i32_0 : i32, i32
  }
  func.func @transform_2(%arg0: i32) -> (i32, i32) {
    %c0_i32 = arith.constant 0 : i32
    %c0_i32_0 = arith.constant 0 : i32
    %c0_i32_1 = arith.constant 0 : i32
    return %c0_i32, %c0_i32_0 : i32, i32
  }
  func.func @transform_3(%arg0: i32) -> (i32, i32) {
    %c0_i32 = arith.constant 0 : i32
    %c0_i32_0 = arith.constant 0 : i32
    return %arg0, %c0_i32 : i32, i32
  }
}

</mosaic_0001>

<llo_original>
// kernel: two_layer_net_forward.1
$region0: #{two_layer_net_forward.1}
  #allocation0 [shape = 'u32[]', space=smem, size = 0x4, offset = 0x4, fixed_abs, tag = 'smem constant byte address 0x4 - core index']
  #allocation1 [shape = 'u32[144,128]{1,0:T(1,128)}', space=vmem, size = 0x12000, scoped, tag = 'internal scratch']
  %s0 = inlined_call_operand.vmem [shape: f32[512,16], index: 0, kind: input, shape index: {}]
  %s1 = inlined_call_operand.vmem [shape: f32[16,128], index: 1, kind: input, shape index: {}]
  %s2 = inlined_call_operand.vmem [shape: f32[128,128], index: 2, kind: input, shape index: {}]
  %s3 = inlined_call_operand.vmem [shape: f32[512,128], index: 3, kind: output, shape index: {}]
  %s4 = sld [smem:[#allocation0]]
  $region45: #{two_layer_net_forward.1} parent=0
    _
  %s6 = ssub.s32 1, %s4
  %s7 = scalar_select 0, %s6, %s4
  loop: start=0, step=1, limit=4
  $region2: #{two_layer_net_forward.1} parent=0 // loop_pre_header
    _
  $region3: #{two_layer_net_forward.1} parent=0 // loop_header
    %s9 = sphi 0, %s13
    %p10 = scmp.ge.s32.totalorder %s9, 4
    %s19 = sphi 0, %s21
    %s22 = sphi 0, %s19
    %s23 = sphi 0, %s22
    %s39 = sphi 0, %s23
    %s43 = sphi 0, %s43
    %s45 = sphi 0, %s43
    %s46 = sphi 0, %s45
    %s60 = sphi 0, %s46
    %s64 = sphi 0, %s64
    %s66 = sphi 0, %s64
    %s67 = sphi 0, %s66
    %s81 = sphi 0, %s67
    %s87 = sphi 0, %s89
    %s90 = sphi 0, %s87
    %s91 = sphi 0, %s90
    %s107 = sphi 0, %s91
  $region4: #{two_layer_net_forward.1} parent=0 // loop_header_branch
    %12 = sbr.rel (%p10) target = $region8
  $region5: #{two_layer_net_forward.1} parent=0 // loop_body
    %s14 = ssub.s32 %s9, 1
    %s15 = ssub.s32 %s9, 2
    %s16 = sadd.s32 %s9, 1
    %s17 = ssub.s32 %s9, %s16
    %p18 = scmp.eq.s32.totalorder %s17, 0
    %s20 = sadd.s32 %s19, 1
    %s21 = scalar_select %p18, %s19, %s20
    %p24 = pneg %p18
    %p25 = scmp.eq.s32.totalorder %s9, 1
    %p26 = por %p24, %p25
    %p27 = scmp.ne.s32.totalorder %s19, %s22
    %p28 = scmp.eq.s32.totalorder %s9, 0
    %p29 = por %p27, %p28
    %p30 = scmp.ne.s32.totalorder %s19, %s22
    %p31 = scmp.eq.s32.totalorder %s14, 1
    %p32 = por %p30, %p31
    %p33 = scmp.ne.s32.totalorder %s22, %s23
    %p34 = scmp.eq.s32.totalorder %s14, 0
    %p35 = por %p33, %p34
    %p36 = scmp.ne.s32.totalorder %s22, %s23
    %p37 = scmp.eq.s32.totalorder %s15, 1
    %p38 = por %p36, %p37
    %p40 = scmp.ne.s32.totalorder %s23, %s39
    %p41 = scmp.eq.s32.totalorder %s15, 0
    %p42 = por %p40, %p41
    %s44 = sadd.s32 %s43, 1
    %p47 = scmp.eq.s32.totalorder %s9, 1
    %p48 = scmp.ne.s32.totalorder %s43, %s45
    %p49 = scmp.eq.s32.totalorder %s9, 0
    %p50 = por %p48, %p49
    %p51 = scmp.ne.s32.totalorder %s43, %s45
    %p52 = scmp.eq.s32.totalorder %s14, 1
    %p53 = por %p51, %p52
    %p54 = scmp.ne.s32.totalorder %s45, %s46
    %p55 = scmp.eq.s32.totalorder %s14, 0
    %p56 = por %p54, %p55
    %p57 = scmp.ne.s32.totalorder %s45, %s46
    %p58 = scmp.eq.s32.totalorder %s15, 1
    %p59 = por %p57, %p58
    %p61 = scmp.ne.s32.totalorder %s46, %s60
    %p62 = scmp.eq.s32.totalorder %s15, 0
    %p63 = por %p61, %p62
    %s65 = sadd.s32 %s64, 1
    %p68 = scmp.eq.s32.totalorder %s9, 1
    %p69 = scmp.ne.s32.totalorder %s64, %s66
    %p70 = scmp.eq.s32.totalorder %s9, 0
    %p71 = por %p69, %p70
    %p72 = scmp.ne.s32.totalorder %s64, %s66
    %p73 = scmp.eq.s32.totalorder %s14, 1
    %p74 = por %p72, %p73
    %p75 = scmp.ne.s32.totalorder %s66, %s67
    %p76 = scmp.eq.s32.totalorder %s14, 0
    %p77 = por %p75, %p76
    %p78 = scmp.ne.s32.totalorder %s66, %s67
    %p79 = scmp.eq.s32.totalorder %s15, 1
    %p80 = por %p78, %p79
    %p82 = scmp.ne.s32.totalorder %s67, %s81
    %p83 = scmp.eq.s32.totalorder %s15, 0
    %p84 = por %p82, %p83
    %s85 = ssub.s32 %s9, %s16
    %p86 = scmp.eq.s32.totalorder %s85, 0
    %s88 = sadd.s32 %s87, 1
    %s89 = scalar_select %p86, %s87, %s88
    %p92 = pneg %p86
    %p93 = scmp.eq.s32.totalorder %s9, 1
    %p94 = por %p92, %p93
    %p95 = scmp.ne.s32.totalorder %s87, %s90
    %p96 = scmp.eq.s32.totalorder %s9, 0
    %p97 = por %p95, %p96
    %p98 = scmp.ne.s32.totalorder %s87, %s90
    %p99 = scmp.eq.s32.totalorder %s14, 1
    %p100 = por %p98, %p99
    %p101 = scmp.ne.s32.totalorder %s90, %s91
    %p102 = scmp.eq.s32.totalorder %s14, 0
    %p103 = por %p101, %p102
    %p104 = scmp.ne.s32.totalorder %s90, %s91
    %p105 = scmp.eq.s32.totalorder %s15, 1
    %p106 = por %p104, %p105
    %p108 = scmp.ne.s32.totalorder %s91, %s107
    %p109 = scmp.eq.s32.totalorder %s15, 0
    %p110 = por %p108, %p109
    %p111 = scmp.le.s32.totalorder 1, %s9
    %p112 = scmp.lt.s32.totalorder %s9, 3
    %p113 = pnand %p111, %p112
    %p114 = pneg %p113
    // Predicated region
    $region9: #{two_layer_net_forward.1} parent=5 // pred_check
      _
    $region10: #{two_layer_net_forward.1} parent=5 // pred_check_branch
      %116 = sbr.rel (%p113) target = $region12
    $region11: #{two_layer_net_forward.1} parent=5 // pred_region
      %s117 = ssub.s32 %s9, 1
      // Predicated region
      $region13: #{two_layer_net_forward.1} parent=11 // pred_check
        %p118 = pneg %p56
      $region14: #{two_layer_net_forward.1} parent=11 // pred_check_branch
        %120 = sbr.rel (%p118) target = $region16
      $region15: #{two_layer_net_forward.1} parent=11 // pred_region
        _
      $region16: #{two_layer_net_forward.1} parent=11 // pred_fallthru
        _
      // Predicated region
      $region17: #{two_layer_net_forward.1} parent=11 // pred_check
        %p121 = pneg %p77
      $region18: #{two_layer_net_forward.1} parent=11 // pred_check_branch
        %123 = sbr.rel (%p121) target = $region20
      $region19: #{two_layer_net_forward.1} parent=11 // pred_region
        _
      $region20: #{two_layer_net_forward.1} parent=11 // pred_fallthru
        _
    $region12: #{two_layer_net_forward.1} parent=5 // pred_fallthru
      _
    %p124 = scmp.lt.s32.totalorder %s9, 2
    // Predicated region
    $region21: #{two_layer_net_forward.1} parent=5 // pred_check
      %p125 = pneg %p124
    $region22: #{two_layer_net_forward.1} parent=5 // pred_check_branch
      %127 = sbr.rel (%p125) target = $region24
    $region23: #{two_layer_net_forward.1} parent=5 // pred_region
      // Predicated region
      $region25: #{two_layer_net_forward.1} parent=23 // pred_check
        %p128 = pneg %p29
      $region26: #{two_layer_net_forward.1} parent=23 // pred_check_branch
        %130 = sbr.rel (%p128) target = $region28
      $region27: #{two_layer_net_forward.1} parent=23 // pred_region
        %s131 = smul.u32 32, %s9
        %p132 = scmp.lt.s32.totalorder %s131, 63
        %s133 = scalar_select %p132, %s131, 63
        %s134 = smul.addr %s133, 8
        %s135 = scalar_lea.vmem %s0, %s134
        %s136 = smul.u32 32, %s9
      $region28: #{two_layer_net_forward.1} parent=23 // pred_fallthru
        _
    $region24: #{two_layer_net_forward.1} parent=5 // pred_fallthru
      _
    %p137 = scmp.le.s32.totalorder 1, %s9
    %p138 = scmp.lt.s32.totalorder %s9, 3
    %p139 = pnand %p137, %p138
    %p140 = pneg %p139
    // Predicated region
    $region29: #{two_layer_net_forward.1} parent=5 // pred_check
      _
    $region30: #{two_layer_net_forward.1} parent=5 // pred_check_branch
      %142 = sbr.rel (%p139) target = $region32
    $region31: #{two_layer_net_forward.1} parent=5 // pred_region
      %s143 = ssub.s32 %s9, 1
      %s144 = smul.u32 32, %s14
      %p145 = scmp.lt.s32.totalorder %s144, 63
      %s146 = scalar_select %p145, %s144, 63
      %s147 = smul.addr %s146, 8
      %s148 = scalar_lea.vmem %s0, %s147
      %p149 = pneg %p35
      %p150 = pneg %p32
      %p151 = pneg %p56
      %p152 = pneg %p53
      %p153 = pneg %p77
      %p154 = pneg %p74
      %p155 = pneg %p103
      %p156 = pneg %p100
      %s157 = smul.u32 32, %s14
      %p158 = scmp.lt.s32.totalorder %s157, 63
      %s159 = scalar_select %p158, %s157, 63
      %s160 = smul.addr %s159, 8
      %s161 = scalar_lea.vmem %s3, %s160
      %s162 = smul.u32 32, %s14
      %p163 = scmp.lt.s32.totalorder %s162, 63
      %s164 = scalar_select %p163, %s162, 63
      %s165 = smul.addr %s164, 8
      %s166 = scalar_lea.vmem %s0, %s165
      %s167 = smul.u32 32, %s14
      %s168 = smul.u32 32, %s14
      %p169 = scmp.lt.s32.totalorder %s168, 63
      %s170 = scalar_select %p169, %s168, 63
      %s171 = smul.addr %s170, 8
      %s172 = scalar_lea.vmem %s3, %s171
      %s173 = smul.u32 32, %s14
      %v174 = vld [vmem:[%s166] sm:$0xff]
      %v175 = vld [vmem:[%s166 + $0x8] sm:$0xff]
      %v176 = vld [vmem:[%s166 + $0x10] sm:$0xff]
      %v177 = vld [vmem:[%s166 + $0x18] sm:$0xff]
      %v178 = vld [vmem:[%s166 + $0x20] sm:$0xff]
      %v179 = vld [vmem:[%s166 + $0x28] sm:$0xff]
      %v180 = vld [vmem:[%s166 + $0x30] sm:$0xff]
      %v181 = vld [vmem:[%s166 + $0x38] sm:$0xff]
      %v182 = vld [vmem:[%s166 + $0x40] sm:$0xff]
      %v183 = vld [vmem:[%s166 + $0x48] sm:$0xff]
      %v184 = vld [vmem:[%s166 + $0x50] sm:$0xff]
      %v185 = vld [vmem:[%s166 + $0x58] sm:$0xff]
      %v186 = vld [vmem:[%s166 + $0x60] sm:$0xff]
      %v187 = vld [vmem:[%s166 + $0x68] sm:$0xff]
      %v188 = vld [vmem:[%s166 + $0x70] sm:$0xff]
      %v189 = vld [vmem:[%s166 + $0x78] sm:$0xff]
      %v190 = vld [vmem:[%s166 + $0x80] sm:$0xff]
      %v191 = vld [vmem:[%s166 + $0x88] sm:$0xff]
      %v192 = vld [vmem:[%s166 + $0x90] sm:$0xff]
      %v193 = vld [vmem:[%s166 + $0x98] sm:$0xff]
      %v194 = vld [vmem:[%s166 + $0xa0] sm:$0xff]
      %v195 = vld [vmem:[%s166 + $0xa8] sm:$0xff]
      %v196 = vld [vmem:[%s166 + $0xb0] sm:$0xff]
      %v197 = vld [vmem:[%s166 + $0xb8] sm:$0xff]
      %v198 = vld [vmem:[%s166 + $0xc0] sm:$0xff]
      %v199 = vld [vmem:[%s166 + $0xc8] sm:$0xff]
      %v200 = vld [vmem:[%s166 + $0xd0] sm:$0xff]
      %v201 = vld [vmem:[%s166 + $0xd8] sm:$0xff]
      %v202 = vld [vmem:[%s166 + $0xe0] sm:$0xff]
      %v203 = vld [vmem:[%s166 + $0xe8] sm:$0xff]
      %v204 = vld [vmem:[%s166 + $0xf0] sm:$0xff]
      %v205 = vld [vmem:[%s166 + $0xf8] sm:$0xff]
      %v206 = vld [vmem:[%s1] sm:$0xff]
      %v207 = vld [vmem:[%s1 + $0x8] sm:$0xff]
      %vm208 = vcmask 130048
      %v210 = vsel %vm208, %v174, 0
      %v213 = vsel %vm208, %v175, 0
      %v216 = vsel %vm208, %v176, 0
      %v219 = vsel %vm208, %v177, 0
      %v222 = vsel %vm208, %v178, 0
      %v225 = vsel %vm208, %v179, 0
      %v228 = vsel %vm208, %v180, 0
      %v231 = vsel %vm208, %v181, 0
      %v234 = vsel %vm208, %v182, 0
      %v237 = vsel %vm208, %v183, 0
      %v240 = vsel %vm208, %v184, 0
      %v243 = vsel %vm208, %v185, 0
      %v246 = vsel %vm208, %v186, 0
      %v249 = vsel %vm208, %v187, 0
      %v252 = vsel %vm208, %v188, 0
      %v255 = vsel %vm208, %v189, 0
      %v258 = vsel %vm208, %v190, 0
      %v261 = vsel %vm208, %v191, 0
      %v264 = vsel %vm208, %v192, 0
      %v267 = vsel %vm208, %v193, 0
      %v270 = vsel %vm208, %v194, 0
      %v273 = vsel %vm208, %v195, 0
      %v276 = vsel %vm208, %v196, 0
      %v279 = vsel %vm208, %v197, 0
      %v282 = vsel %vm208, %v198, 0
      %v285 = vsel %vm208, %v199, 0
      %v288 = vsel %vm208, %v200, 0
      %v291 = vsel %vm208, %v201, 0
      %v294 = vsel %vm208, %v202, 0
      %v297 = vsel %vm208, %v203, 0
      %v300 = vsel %vm208, %v204, 0
      %v303 = vsel %vm208, %v205, 0
      %305 = vmatprep.subr.mxu0 0.0
      %306 = vmatpush1.msra.mxu0 %v206
      %307 = vmatprep.subr.mxu0 0.0
      %308 = vmatpush1.msra.mxu0 %v207
      %309 = vmatprep.subr.mxu0 0.0
      %310 = vmatpush1.msra.mxu0 0.0
      %311 = vmatprep.subr.mxu0 0.0
      %312 = vmatpush1.msra.mxu0 0.0
      %313 = vmatprep.subr.mxu0 0.0
      %314 = vmatpush1.msra.mxu0 0.0
      %315 = vmatprep.subr.mxu0 0.0
      %316 = vmatpush1.msra.mxu0 0.0
      %317 = vmatprep.subr.mxu0 0.0
      %318 = vmatpush1.msra.mxu0 0.0
      %319 = vmatprep.subr.mxu0 0.0
      %320 = vmatpush1.msra.mxu0 0.0
      %321 = vmatprep.subr.mxu0 0.0
      %322 = vmatpush1.msra.mxu0 0.0
      %323 = vmatprep.subr.mxu0 0.0
      %324 = vmatpush1.msra.mxu0 0.0
      %325 = vmatprep.subr.mxu0 0.0
      %326 = vmatpush1.msra.mxu0 0.0
      %327 = vmatprep.subr.mxu0 0.0
      %328 = vmatpush1.msra.mxu0 0.0
      %329 = vmatprep.subr.mxu0 0.0
      %330 = vmatpush1.msra.mxu0 0.0
      %331 = vmatprep.subr.mxu0 0.0
      %332 = vmatpush1.msra.mxu0 0.0
      %333 = vmatprep.subr.mxu0 0.0
      %334 = vmatpush1.msra.mxu0 0.0
      %335 = vmatprep.subr.mxu0 0.0
      %336 = vmatpush1.msra.mxu0 0.0
      %337 = vmatprep.subr.mxu0 0.0
      %338 = vmatpush1.msra.mxu0 0.0
      %339 = vmatprep.subr.mxu0 0.0
      %340 = vmatpush1.msra.mxu0 0.0
      %341 = vmatprep.subr.mxu0 0.0
      %342 = vmatpush1.msra.mxu0 0.0
      %343 = vmatprep.subr.mxu0 0.0
      %344 = vmatpush1.msra.mxu0 0.0
      %345 = vmatprep.subr.mxu0 0.0
      %346 = vmatpush1.msra.mxu0 0.0
      %347 = vmatprep.subr.mxu0 0.0
      %348 = vmatpush1.msra.mxu0 0.0
      %349 = vmatprep.subr.mxu0 0.0
      %350 = vmatpush1.msra.mxu0 0.0
      %351 = vmatprep.subr.mxu0 0.0
      %352 = vmatpush1.msra.mxu0 0.0
      %353 = vmatprep.subr.mxu0 0.0
      %354 = vmatpush1.msra.mxu0 0.0
      %355 = vmatprep.subr.mxu0 0.0
      %356 = vmatpush1.msra.mxu0 0.0
      %357 = vmatprep.subr.mxu0 0.0
      %358 = vmatpush1.msra.mxu0 0.0
      %359 = vmatprep.subr.mxu0 0.0
      %360 = vmatpush1.msra.mxu0 0.0
      %361 = vmatprep.subr.mxu0 0.0
      %362 = vmatpush1.msra.mxu0 0.0
      %363 = vmatprep.subr.mxu0 0.0
      %364 = vmatpush1.msra.mxu0 0.0
      %365 = vmatprep.subr.mxu0 0.0
      %366 = vmatpush1.msra.mxu0 0.0
      %367 = vmatprep.subr.mxu0 0.0
      %368 = vmatpush1.msra.mxu0 0.0
      %369 = vmatprep.mubr.f32.mxu0 0.0
      %370 = vmatmul.mubr.f32.gmra.mrb[0].mxu0 %v210
      %v371 = vpop.f32.mrb[0].mxu0
      %v372 = vadd.f32 0.0, %v371
      %v373 = vpop.f32.mrb[0].mxu0
      %374 = vmatprep.mubr.f32.mxu0 0.0
      %375 = vmatmul.mubr.f32.gmra.mrb[0].mxu0 %v213
      %v376 = vpop.f32.mrb[0].mxu0
      %v377 = vadd.f32 0.0, %v376
      %v378 = vpop.f32.mrb[0].mxu0
      %379 = vmatprep.mubr.f32.mxu0 0.0
      %380 = vmatmul.mubr.f32.gmra.mrb[0].mxu0 %v216
      %v381 = vpop.f32.mrb[0].mxu0
      %v382 = vadd.f32 0.0, %v381
      %v383 = vpop.f32.mrb[0].mxu0
      %384 = vmatprep.mubr.f32.mxu0 0.0
      %385 = vmatmul.mubr.f32.gmra.mrb[0].mxu0 %v219
      %v386 = vpop.f32.mrb[0].mxu0
      %v387 = vadd.f32 0.0, %v386
      %v388 = vpop.f32.mrb[0].mxu0
      %389 = vmatprep.mubr.f32.mxu0 0.0
      %390 = vmatmul.mubr.f32.gmra.mrb[0].mxu0 %v222
      %v391 = vpop.f32.mrb[0].mxu0
      %v392 = vadd.f32 0.0, %v391
      %v393 = vpop.f32.mrb[0].mxu0
      %394 = vmatprep.mubr.f32.mxu0 0.0
      %395 = vmatmul.mubr.f32.gmra.mrb[0].mxu0 %v225
      %v396 = vpop.f32.mrb[0].mxu0
      %v397 = vadd.f32 0.0, %v396
      %v398 = vpop.f32.mrb[0].mxu0
      %399 = vmatprep.mubr.f32.mxu0 0.0
      %400 = vmatmul.mubr.f32.gmra.mrb[0].mxu0 %v228
      %v401 = vpop.f32.mrb[0].mxu0
      %v402 = vadd.f32 0.0, %v401
      %v403 = vpop.f32.mrb[0].mxu0
      %404 = vmatprep.mubr.f32.mxu0 0.0
      %405 = vmatmul.mubr.f32.gmra.mrb[0].mxu0 %v231
      %v406 = vpop.f32.mrb[0].mxu0
      %v407 = vadd.f32 0.0, %v406
      %v408 = vpop.f32.mrb[0].mxu0
      %409 = vmatprep.mubr.f32.mxu0 0.0
      %410 = vmatmul.mubr.f32.gmra.mrb[0].mxu0 %v234
      %v411 = vpop.f32.mrb[0].mxu0
      %v412 = vadd.f32 0.0, %v411
      %v413 = vpop.f32.mrb[0].mxu0
      %414 = vmatprep.mubr.f32.mxu0 0.0
      %415 = vmatmul.mubr.f32.gmra.mrb[0].mxu0 %v237
      %v416 = vpop.f32.mrb[0].mxu0
      %v417 = vadd.f32 0.0, %v416
      %v418 = vpop.f32.mrb[0].mxu0
      %419 = vmatprep.mubr.f32.mxu0 0.0
      %420 = vmatmul.mubr.f32.gmra.mrb[0].mxu0 %v240
      %v421 = vpop.f32.mrb[0].mxu0
      %v422 = vadd.f32 0.0, %v421
      %v423 = vpop.f32.mrb[0].mxu0
      %424 = vmatprep.mubr.f32.mxu0 0.0
      %425 = vmatmul.mubr.f32.gmra.mrb[0].mxu0 %v243
      %v426 = vpop.f32.mrb[0].mxu0
      %v427 = vadd.f32 0.0, %v426
      %v428 = vpop.f32.mrb[0].mxu0
      %429 = vmatprep.mubr.f32.mxu0 0.0
      %430 = vmatmul.mubr.f32.gmra.mrb[0].mxu0 %v246
      %v431 = vpop.f32.mrb[0].mxu0
      %v432 = vadd.f32 0.0, %v431
      %v433 = vpop.f32.mrb[0].mxu0
      %434 = vmatprep.mubr.f32.mxu0 0.0
      %435 = vmatmul.mubr.f32.gmra.mrb[0].mxu0 %v249
      %v436 = vpop.f32.mrb[0].mxu0
      %v437 = vadd.f32 0.0, %v436
      %v438 = vpop.f32.mrb[0].mxu0
      %439 = vmatprep.mubr.f32.mxu0 0.0
      %440 = vmatmul.mubr.f32.gmra.mrb[0].mxu0 %v252
      %v441 = vpop.f32.mrb[0].mxu0
      %v442 = vadd.f32 0.0, %v441
      %v443 = vpop.f32.mrb[0].mxu0
      %444 = vmatprep.mubr.f32.mxu0 0.0
      %445 = vmatmul.mubr.f32.gmra.mrb[0].mxu0 %v255
      %v446 = vpop.f32.mrb[0].mxu0
      %v447 = vadd.f32 0.0, %v446
      %v448 = vpop.f32.mrb[0].mxu0
      %449 = vmatprep.mubr.f32.mxu0 0.0
      %450 = vmatmul.mubr.f32.gmra.mrb[0].mxu0 %v258
      %v451 = vpop.f32.mrb[0].mxu0
      %v452 = vadd.f32 0.0, %v451
      %v453 = vpop.f32.mrb[0].mxu0
      %454 = vmatprep.mubr.f32.mxu0 0.0
      %455 = vmatmul.mubr.f32.gmra.mrb[0].mxu0 %v261
      %v456 = vpop.f32.mrb[0].mxu0
      %v457 = vadd.f32 0.0, %v456
      %v458 = vpop.f32.mrb[0].mxu0
      %459 = vmatprep.mubr.f32.mxu0 0.0
      %460 = vmatmul.mubr.f32.gmra.mrb[0].mxu0 %v264
      %v461 = vpop.f32.mrb[0].mxu0
      %v462 = vadd.f32 0.0, %v461
      %v463 = vpop.f32.mrb[0].mxu0
      %464 = vmatprep.mubr.f32.mxu0 0.0
      %465 = vmatmul.mubr.f32.gmra.mrb[0].mxu0 %v267
      %v466 = vpop.f32.mrb[0].mxu0
      %v467 = vadd.f32 0.0, %v466
      %v468 = vpop.f32.mrb[0].mxu0
      %469 = vmatprep.mubr.f32.mxu0 0.0
      %470 = vmatmul.mubr.f32.gmra.mrb[0].mxu0 %v270
      %v471 = vpop.f32.mrb[0].mxu0
      %v472 = vadd.f32 0.0, %v471
      %v473 = vpop.f32.mrb[0].mxu0
      %474 = vmatprep.mubr.f32.mxu0 0.0
      %475 = vmatmul.mubr.f32.gmra.mrb[0].mxu0 %v273
      %v476 = vpop.f32.mrb[0].mxu0
      %v477 = vadd.f32 0.0, %v476
      %v478 = vpop.f32.mrb[0].mxu0
      %479 = vmatprep.mubr.f32.mxu0 0.0
      %480 = vmatmul.mubr.f32.gmra.mrb[0].mxu0 %v276
      %v481 = vpop.f32.mrb[0].mxu0
      %v482 = vadd.f32 0.0, %v481
      %v483 = vpop.f32.mrb[0].mxu0
      %484 = vmatprep.mubr.f32.mxu0 0.0
      %485 = vmatmul.mubr.f32.gmra.mrb[0].mxu0 %v279
      %v486 = vpop.f32.mrb[0].mxu0
      %v487 = vadd.f32 0.0, %v486
      %v488 = vpop.f32.mrb[0].mxu0
      %489 = vmatprep.mubr.f32.mxu0 0.0
      %490 = vmatmul.mubr.f32.gmra.mrb[0].mxu0 %v282
      %v491 = vpop.f32.mrb[0].mxu0
      %v492 = vadd.f32 0.0, %v491
      %v493 = vpop.f32.mrb[0].mxu0
      %494 = vmatprep.mubr.f32.mxu0 0.0
      %495 = vmatmul.mubr.f32.gmra.mrb[0].mxu0 %v285
      %v496 = vpop.f32.mrb[0].mxu0
      %v497 = vadd.f32 0.0, %v496
      %v498 = vpop.f32.mrb[0].mxu0
      %499 = vmatprep.mubr.f32.mxu0 0.0
      %500 = vmatmul.mubr.f32.gmra.mrb[0].mxu0 %v288
      %v501 = vpop.f32.mrb[0].mxu0
      %v502 = vadd.f32 0.0, %v501
      %v503 = vpop.f32.mrb[0].mxu0
      %504 = vmatprep.mubr.f32.mxu0 0.0
      %505 = vmatmul.mubr.f32.gmra.mrb[0].mxu0 %v291
      %v506 = vpop.f32.mrb[0].mxu0
      %v507 = vadd.f32 0.0, %v506
      %v508 = vpop.f32.mrb[0].mxu0
      %509 = vmatprep.mubr.f32.mxu0 0.0
      %510 = vmatmul.mubr.f32.gmra.mrb[0].mxu0 %v294
      %v511 = vpop.f32.mrb[0].mxu0
      %v512 = vadd.f32 0.0, %v511
      %v513 = vpop.f32.mrb[0].mxu0
      %514 = vmatprep.mubr.f32.mxu0 0.0
      %515 = vmatmul.mubr.f32.gmra.mrb[0].mxu0 %v297
      %v516 = vpop.f32.mrb[0].mxu0
      %v517 = vadd.f32 0.0, %v516
      %v518 = vpop.f32.mrb[0].mxu0
      %519 = vmatprep.mubr.f32.mxu0 0.0
      %520 = vmatmul.mubr.f32.gmra.mrb[0].mxu0 %v300
      %v521 = vpop.f32.mrb[0].mxu0
      %v522 = vadd.f32 0.0, %v521
      %v523 = vpop.f32.mrb[0].mxu0
      %524 = vmatprep.mubr.f32.mxu0 0.0
      %525 = vmatmul.mubr.f32.gmra.mrb[0].mxu0 %v303
      %v526 = vpop.f32.mrb[0].mxu0
      %v527 = vadd.f32 0.0, %v526
      %v528 = vpop.f32.mrb[0].mxu0
      %529 = vdwg.mxu0
      %v530 = vmax.f32 %v372, 0.0
      %v531 = vmax.f32 %v377, 0.0
      %v532 = vmax.f32 %v382, 0.0
      %v533 = vmax.f32 %v387, 0.0
      %v534 = vmax.f32 %v392, 0.0
      %v535 = vmax.f32 %v397, 0.0
      %v536 = vmax.f32 %v402, 0.0
      %v537 = vmax.f32 %v407, 0.0
      %v538 = vmax.f32 %v412, 0.0
      %v539 = vmax.f32 %v417, 0.0
      %v540 = vmax.f32 %v422, 0.0
      %v541 = vmax.f32 %v427, 0.0
      %v542 = vmax.f32 %v432, 0.0
      %v543 = vmax.f32 %v437, 0.0
      %v544 = vmax.f32 %v442, 0.0
      %v545 = vmax.f32 %v447, 0.0
      %v546 = vmax.f32 %v452, 0.0
      %v547 = vmax.f32 %v457, 0.0
      %v548 = vmax.f32 %v462, 0.0
      %v549 = vmax.f32 %v467, 0.0
      %v550 = vmax.f32 %v472, 0.0
      %v551 = vmax.f32 %v477, 0.0
      %v552 = vmax.f32 %v482, 0.0
      %v553 = vmax.f32 %v487, 0.0
      %v554 = vmax.f32 %v492, 0.0
      %v555 = vmax.f32 %v497, 0.0
      %v556 = vmax.f32 %v502, 0.0
      %v557 = vmax.f32 %v507, 0.0
      %v558 = vmax.f32 %v512, 0.0
      %v559 = vmax.f32 %v517, 0.0
      %v560 = vmax.f32 %v522, 0.0
      %v561 = vmax.f32 %v527, 0.0
      %v562 = vld [vmem:[%s2] sm:$0xff]
      %v563 = vld [vmem:[%s2 + $0x8] sm:$0xff]
      %v564 = vld [vmem:[%s2 + $0x10] sm:$0xff]
      %v565 = vld [vmem:[%s2 + $0x18] sm:$0xff]
      %v566 = vld [vmem:[%s2 + $0x20] sm:$0xff]
      %v567 = vld [vmem:[%s2 + $0x28] sm:$0xff]
      %v568 = vld [vmem:[%s2 + $0x30] sm:$0xff]
      %v569 = vld [vmem:[%s2 + $0x38] sm:$0xff]
      %v570 = vld [vmem:[%s2 + $0x40] sm:$0xff]
      %v571 = vld [vmem:[%s2 + $0x48] sm:$0xff]
      %v572 = vld [vmem:[%s2 + $0x50] sm:$0xff]
      %v573 = vld [vmem:[%s2 + $0x58] sm:$0xff]
      %v574 = vld [vmem:[%s2 + $0x60] sm:$0xff]
      %v575 = vld [vmem:[%s2 + $0x68] sm:$0xff]
      %v576 = vld [vmem:[%s2 + $0x70] sm:$0xff]
      %v577 = vld [vmem:[%s2 + $0x78] sm:$0xff]
      %578 = vmatprep.subr.mxu0 0.0
      %579 = vmatpush1.msra.mxu0 %v562
      %580 = vmatprep.subr.mxu0 0.0
      %581 = vmatpush1.msra.mxu0 %v563
      %582 = vmatprep.subr.mxu0 0.0
      %583 = vmatpush1.msra.mxu0 %v564
      %584 = vmatprep.subr.mxu0 0.0
      %585 = vmatpush1.msra.mxu0 %v565
      %586 = vmatprep.subr.mxu0 0.0
      %587 = vmatpush1.msra.mxu0 %v566
      %588 = vmatprep.subr.mxu0 0.0
      %589 = vmatpush1.msra.mxu0 %v567
      %590 = vmatprep.subr.mxu0 0.0
      %591 = vmatpush1.msra.mxu0 %v568
      %592 = vmatprep.subr.mxu0 0.0
      %593 = vmatpush1.msra.mxu0 %v569
      %594 = vmatprep.subr.mxu0 0.0
      %595 = vmatpush1.msra.mxu0 %v570
      %596 = vmatprep.subr.mxu0 0.0
      %597 = vmatpush1.msra.mxu0 %v571
      %598 = vmatprep.subr.mxu0 0.0
      %599 = vmatpush1.msra.mxu0 %v572
      %600 = vmatprep.subr.mxu0 0.0
      %601 = vmatpush1.msra.mxu0 %v573
      %602 = vmatprep.subr.mxu0 0.0
      %603 = vmatpush1.msra.mxu0 %v574
      %604 = vmatprep.subr.mxu0 0.0
      %605 = vmatpush1.msra.mxu0 %v575
      %606 = vmatprep.subr.mxu0 0.0
      %607 = vmatpush1.msra.mxu0 %v576
      %608 = vmatprep.subr.mxu0 0.0
      %609 = vmatpush1.msra.mxu0 %v577
      %610 = vmatprep.subr.mxu0 0.0
      %611 = vmatpush1.msra.mxu0 0.0
      %612 = vmatprep.subr.mxu0 0.0
      %613 = vmatpush1.msra.mxu0 0.0
      %614 = vmatprep.subr.mxu0 0.0
      %615 = vmatpush1.msra.mxu0 0.0
      %616 = vmatprep.subr.mxu0 0.0
      %617 = vmatpush1.msra.mxu0 0.0
      %618 = vmatprep.subr.mxu0 0.0
      %619 = vmatpush1.msra.mxu0 0.0
      %620 = vmatprep.subr.mxu0 0.0
      %621 = vmatpush1.msra.mxu0 0.0
      %622 = vmatprep.subr.mxu0 0.0
      %623 = vmatpush1.msra.mxu0 0.0
      %624 = vmatprep.subr.mxu0 0.0
      %625 = vmatpush1.msra.mxu0 0.0
      %626 = vmatprep.subr.mxu0 0.0
      %627 = vmatpush1.msra.mxu0 0.0
      %628 = vmatprep.subr.mxu0 0.0
      %629 = vmatpush1.msra.mxu0 0.0
      %630 = vmatprep.subr.mxu0 0.0
      %631 = vmatpush1.msra.mxu0 0.0
      %632 = vmatprep.subr.mxu0 0.0
      %633 = vmatpush1.msra.mxu0 0.0
      %634 = vmatprep.subr.mxu0 0.0
      %635 = vmatpush1.msra.mxu0 0.0
      %636 = vmatprep.subr.mxu0 0.0
      %637 = vmatpush1.msra.mxu0 0.0
      %638 = vmatprep.subr.mxu0 0.0
      %639 = vmatpush1.msra.mxu0 0.0
      %640 = vmatprep.subr.mxu0 0.0
      %641 = vmatpush1.msra.mxu0 0.0
      %642 = vmatprep.mubr.f32.mxu0 0.0
      %643 = vmatmul.mubr.f32.gmra.mrb[0].mxu0 %v530
      %v644 = vpop.f32.mrb[0].mxu0
      %v645 = vadd.f32 0.0, %v644
      %v646 = vpop.f32.mrb[0].mxu0
      %647 = vmatprep.mubr.f32.mxu0 0.0
      %648 = vmatmul.mubr.f32.gmra.mrb[0].mxu0 %v531
      %v649 = vpop.f32.mrb[0].mxu0
      %v650 = vadd.f32 0.0, %v649
      %v651 = vpop.f32.mrb[0].mxu0
      %652 = vmatprep.mubr.f32.mxu0 0.0
      %653 = vmatmul.mubr.f32.gmra.mrb[0].mxu0 %v532
      %v654 = vpop.f32.mrb[0].mxu0
      %v655 = vadd.f32 0.0, %v654
      %v656 = vpop.f32.mrb[0].mxu0
      %657 = vmatprep.mubr.f32.mxu0 0.0
      %658 = vmatmul.mubr.f32.gmra.mrb[0].mxu0 %v533
      %v659 = vpop.f32.mrb[0].mxu0
      %v660 = vadd.f32 0.0, %v659
      %v661 = vpop.f32.mrb[0].mxu0
      %662 = vmatprep.mubr.f32.mxu0 0.0
      %663 = vmatmul.mubr.f32.gmra.mrb[0].mxu0 %v534
      %v664 = vpop.f32.mrb[0].mxu0
      %v665 = vadd.f32 0.0, %v664
      %v666 = vpop.f32.mrb[0].mxu0
      %667 = vmatprep.mubr.f32.mxu0 0.0
      %668 = vmatmul.mubr.f32.gmra.mrb[0].mxu0 %v535
      %v669 = vpop.f32.mrb[0].mxu0
      %v670 = vadd.f32 0.0, %v669
      %v671 = vpop.f32.mrb[0].mxu0
      %672 = vmatprep.mubr.f32.mxu0 0.0
      %673 = vmatmul.mubr.f32.gmra.mrb[0].mxu0 %v536
      %v674 = vpop.f32.mrb[0].mxu0
      %v675 = vadd.f32 0.0, %v674
      %v676 = vpop.f32.mrb[0].mxu0
      %677 = vmatprep.mubr.f32.mxu0 0.0
      %678 = vmatmul.mubr.f32.gmra.mrb[0].mxu0 %v537
      %v679 = vpop.f32.mrb[0].mxu0
      %v680 = vadd.f32 0.0, %v679
      %v681 = vpop.f32.mrb[0].mxu0
      %682 = vmatprep.mubr.f32.mxu0 0.0
      %683 = vmatmul.mubr.f32.gmra.mrb[0].mxu0 %v538
      %v684 = vpop.f32.mrb[0].mxu0
      %v685 = vadd.f32 0.0, %v684
      %v686 = vpop.f32.mrb[0].mxu0
      %687 = vmatprep.mubr.f32.mxu0 0.0
      %688 = vmatmul.mubr.f32.gmra.mrb[0].mxu0 %v539
      %v689 = vpop.f32.mrb[0].mxu0
      %v690 = vadd.f32 0.0, %v689
      %v691 = vpop.f32.mrb[0].mxu0
      %692 = vmatprep.mubr.f32.mxu0 0.0
      %693 = vmatmul.mubr.f32.gmra.mrb[0].mxu0 %v540
      %v694 = vpop.f32.mrb[0].mxu0
      %v695 = vadd.f32 0.0, %v694
      %v696 = vpop.f32.mrb[0].mxu0
      %697 = vmatprep.mubr.f32.mxu0 0.0
      %698 = vmatmul.mubr.f32.gmra.mrb[0].mxu0 %v541
      %v699 = vpop.f32.mrb[0].mxu0
      %v700 = vadd.f32 0.0, %v699
      %v701 = vpop.f32.mrb[0].mxu0
      %702 = vmatprep.mubr.f32.mxu0 0.0
      %703 = vmatmul.mubr.f32.gmra.mrb[0].mxu0 %v542
      %v704 = vpop.f32.mrb[0].mxu0
      %v705 = vadd.f32 0.0, %v704
      %v706 = vpop.f32.mrb[0].mxu0
      %707 = vmatprep.mubr.f32.mxu0 0.0
      %708 = vmatmul.mubr.f32.gmra.mrb[0].mxu0 %v543
      %v709 = vpop.f32.mrb[0].mxu0
      %v710 = vadd.f32 0.0, %v709
      %v711 = vpop.f32.mrb[0].mxu0
      %712 = vmatprep.mubr.f32.mxu0 0.0
      %713 = vmatmul.mubr.f32.gmra.mrb[0].mxu0 %v544
      %v714 = vpop.f32.mrb[0].mxu0
      %v715 = vadd.f32 0.0, %v714
      %v716 = vpop.f32.mrb[0].mxu0
      %717 = vmatprep.mubr.f32.mxu0 0.0
      %718 = vmatmul.mubr.f32.gmra.mrb[0].mxu0 %v545
      %v719 = vpop.f32.mrb[0].mxu0
      %v720 = vadd.f32 0.0, %v719
      %v721 = vpop.f32.mrb[0].mxu0
      %722 = vmatprep.mubr.f32.mxu0 0.0
      %723 = vmatmul.mubr.f32.gmra.mrb[0].mxu0 %v546
      %v724 = vpop.f32.mrb[0].mxu0
      %v725 = vadd.f32 0.0, %v724
      %v726 = vpop.f32.mrb[0].mxu0
      %727 = vmatprep.mubr.f32.mxu0 0.0
      %728 = vmatmul.mubr.f32.gmra.mrb[0].mxu0 %v547
      %v729 = vpop.f32.mrb[0].mxu0
      %v730 = vadd.f32 0.0, %v729
      %v731 = vpop.f32.mrb[0].mxu0
      %732 = vmatprep.mubr.f32.mxu0 0.0
      %733 = vmatmul.mubr.f32.gmra.mrb[0].mxu0 %v548
      %v734 = vpop.f32.mrb[0].mxu0
      %v735 = vadd.f32 0.0, %v734
      %v736 = vpop.f32.mrb[0].mxu0
      %737 = vmatprep.mubr.f32.mxu0 0.0
      %738 = vmatmul.mubr.f32.gmra.mrb[0].mxu0 %v549
      %v739 = vpop.f32.mrb[0].mxu0
      %v740 = vadd.f32 0.0, %v739
      %v741 = vpop.f32.mrb[0].mxu0
      %742 = vmatprep.mubr.f32.mxu0 0.0
      %743 = vmatmul.mubr.f32.gmra.mrb[0].mxu0 %v550
      %v744 = vpop.f32.mrb[0].mxu0
      %v745 = vadd.f32 0.0, %v744
      %v746 = vpop.f32.mrb[0].mxu0
      %747 = vmatprep.mubr.f32.mxu0 0.0
      %748 = vmatmul.mubr.f32.gmra.mrb[0].mxu0 %v551
      %v749 = vpop.f32.mrb[0].mxu0
      %v750 = vadd.f32 0.0, %v749
      %v751 = vpop.f32.mrb[0].mxu0
      %752 = vmatprep.mubr.f32.mxu0 0.0
      %753 = vmatmul.mubr.f32.gmra.mrb[0].mxu0 %v552
      %v754 = vpop.f32.mrb[0].mxu0
      %v755 = vadd.f32 0.0, %v754
      %v756 = vpop.f32.mrb[0].mxu0
      %757 = vmatprep.mubr.f32.mxu0 0.0
      %758 = vmatmul.mubr.f32.gmra.mrb[0].mxu0 %v553
      %v759 = vpop.f32.mrb[0].mxu0
      %v760 = vadd.f32 0.0, %v759
      %v761 = vpop.f32.mrb[0].mxu0
      %762 = vmatprep.mubr.f32.mxu0 0.0
      %763 = vmatmul.mubr.f32.gmra.mrb[0].mxu0 %v554
      %v764 = vpop.f32.mrb[0].mxu0
      %v765 = vadd.f32 0.0, %v764
      %v766 = vpop.f32.mrb[0].mxu0
      %767 = vmatprep.mubr.f32.mxu0 0.0
      %768 = vmatmul.mubr.f32.gmra.mrb[0].mxu0 %v555
      %v769 = vpop.f32.mrb[0].mxu0
      %v770 = vadd.f32 0.0, %v769
      %v771 = vpop.f32.mrb[0].mxu0
      %772 = vmatprep.mubr.f32.mxu0 0.0
      %773 = vmatmul.mubr.f32.gmra.mrb[0].mxu0 %v556
      %v774 = vpop.f32.mrb[0].mxu0
      %v775 = vadd.f32 0.0, %v774
      %v776 = vpop.f32.mrb[0].mxu0
      %777 = vmatprep.mubr.f32.mxu0 0.0
      %778 = vmatmul.mubr.f32.gmra.mrb[0].mxu0 %v557
      %v779 = vpop.f32.mrb[0].mxu0
      %v780 = vadd.f32 0.0, %v779
      %v781 = vpop.f32.mrb[0].mxu0
      %782 = vmatprep.mubr.f32.mxu0 0.0
      %783 = vmatmul.mubr.f32.gmra.mrb[0].mxu0 %v558
      %v784 = vpop.f32.mrb[0].mxu0
      %v785 = vadd.f32 0.0, %v784
      %v786 = vpop.f32.mrb[0].mxu0
      %787 = vmatprep.mubr.f32.mxu0 0.0
      %788 = vmatmul.mubr.f32.gmra.mrb[0].mxu0 %v559
      %v789 = vpop.f32.mrb[0].mxu0
      %v790 = vadd.f32 0.0, %v789
      %v791 = vpop.f32.mrb[0].mxu0
      %792 = vmatprep.mubr.f32.mxu0 0.0
      %793 = vmatmul.mubr.f32.gmra.mrb[0].mxu0 %v560
      %v794 = vpop.f32.mrb[0].mxu0
      %v795 = vadd.f32 0.0, %v794
      %v796 = vpop.f32.mrb[0].mxu0
      %797 = vmatprep.mubr.f32.mxu0 0.0
      %798 = vmatmul.mubr.f32.gmra.mrb[0].mxu0 %v561
      %v799 = vpop.f32.mrb[0].mxu0
      %v800 = vadd.f32 0.0, %v799
      %v801 = vpop.f32.mrb[0].mxu0
      %802 = vdwg.mxu0
      %803 = vst [vmem:[%s172] sm:$0xff] %v645
      %804 = vst [vmem:[%s172 + $0x8] sm:$0xff] %v650
      %805 = vst [vmem:[%s172 + $0x10] sm:$0xff] %v655
      %806 = vst [vmem:[%s172 + $0x18] sm:$0xff] %v660
      %807 = vst [vmem:[%s172 + $0x20] sm:$0xff] %v665
      %808 = vst [vmem:[%s172 + $0x28] sm:$0xff] %v670
      %809 = vst [vmem:[%s172 + $0x30] sm:$0xff] %v675
      %810 = vst [vmem:[%s172 + $0x38] sm:$0xff] %v680
      %811 = vst [vmem:[%s172 + $0x40] sm:$0xff] %v685
      %812 = vst [vmem:[%s172 + $0x48] sm:$0xff] %v690
      %813 = vst [vmem:[%s172 + $0x50] sm:$0xff] %v695
      %814 = vst [vmem:[%s172 + $0x58] sm:$0xff] %v700
      %815 = vst [vmem:[%s172 + $0x60] sm:$0xff] %v705
      %816 = vst [vmem:[%s172 + $0x68] sm:$0xff] %v710
      %817 = vst [vmem:[%s172 + $0x70] sm:$0xff] %v715
      %818 = vst [vmem:[%s172 + $0x78] sm:$0xff] %v720
      %819 = vst [vmem:[%s172 + $0x80] sm:$0xff] %v725
      %820 = vst [vmem:[%s172 + $0x88] sm:$0xff] %v730
      %821 = vst [vmem:[%s172 + $0x90] sm:$0xff] %v735
      %822 = vst [vmem:[%s172 + $0x98] sm:$0xff] %v740
      %823 = vst [vmem:[%s172 + $0xa0] sm:$0xff] %v745
      %824 = vst [vmem:[%s172 + $0xa8] sm:$0xff] %v750
      %825 = vst [vmem:[%s172 + $0xb0] sm:$0xff] %v755
      %826 = vst [vmem:[%s172 + $0xb8] sm:$0xff] %v760
      %827 = vst [vmem:[%s172 + $0xc0] sm:$0xff] %v765
      %828 = vst [vmem:[%s172 + $0xc8] sm:$0xff] %v770
      %829 = vst [vmem:[%s172 + $0xd0] sm:$0xff] %v775
      %830 = vst [vmem:[%s172 + $0xd8] sm:$0xff] %v780
      %831 = vst [vmem:[%s172 + $0xe0] sm:$0xff] %v785
      %832 = vst [vmem:[%s172 + $0xe8] sm:$0xff] %v790
      %833 = vst [vmem:[%s172 + $0xf0] sm:$0xff] %v795
      %834 = vst [vmem:[%s172 + $0xf8] sm:$0xff] %v800
      %s835 = smul.u32 32, %s14
      %p836 = scmp.lt.s32.totalorder %s835, 63
      %s837 = scalar_select %p836, %s835, 63
      %s838 = smul.addr %s837, 8
      %s839 = scalar_lea.vmem %s3, %s838
      // Predicated region
      $region33: #{two_layer_net_forward.1} parent=31 // pred_check
        %p840 = pneg %p100
      $region34: #{two_layer_net_forward.1} parent=31 // pred_check_branch
        %842 = sbr.rel (%p840) target = $region36
      $region35: #{two_layer_net_forward.1} parent=31 // pred_region
        %s843 = smul.u32 32, %s14
      $region36: #{two_layer_net_forward.1} parent=31 // pred_fallthru
        _
    $region32: #{two_layer_net_forward.1} parent=5 // pred_fallthru
      _
    %p844 = scmp.le.s32.totalorder 2, %s9
    // Predicated region
    $region37: #{two_layer_net_forward.1} parent=5 // pred_check
      %p845 = pneg %p844
    $region38: #{two_layer_net_forward.1} parent=5 // pred_check_branch
      %847 = sbr.rel (%p845) target = $region40
    $region39: #{two_layer_net_forward.1} parent=5 // pred_region
      %s848 = ssub.s32 %s9, 2
      // Predicated region
      $region41: #{two_layer_net_forward.1} parent=39 // pred_check
        %p849 = pneg %p106
      $region42: #{two_layer_net_forward.1} parent=39 // pred_check_branch
        %851 = sbr.rel (%p849) target = $region44
      $region43: #{two_layer_net_forward.1} parent=39 // pred_region
        %s852 = smul.u32 32, %s15
        %p853 = scmp.lt.s32.totalorder %s852, 63
        %s854 = scalar_select %p853, %s852, 63
        %s855 = smul.addr %s854, 8
        %s856 = scalar_lea.vmem %s3, %s855
      $region44: #{two_layer_net_forward.1} parent=39 // pred_fallthru
        _
    $region40: #{two_layer_net_forward.1} parent=5 // pred_fallthru
      _
  $region6: #{two_layer_net_forward.1} parent=0 // loop_footer
    %s13 = sadd.s32 1, %s9
  $region7: #{two_layer_net_forward.1} parent=0 // loop_footer_branch
    %8 = sbr.rel target = $region3
  $region8: #{two_layer_net_forward.1} parent=0 // loop_exit
    _

</llo_original>
